<compile_context>
chip_gen: v5e
topology: v5e:2x2
jax: 0.10.0
libtpu: 0.0.40
codegen_flags: <defaults>
</compile_context>

<pallas_src>
import functools

import jax
import jax.numpy as jnp
from jax.experimental import pallas as pl
from jax.experimental.pallas import tpu as pltpu


def _round_up(x: int, m: int) -> int:
    return ((x + m - 1) // m) * m


def _vmem_capacity_bytes() -> int:
    """Physical per-core VMEM; conservative 64 MiB fallback (v7x) if unknown."""
    try:
        info = pltpu.get_tpu_info()
        for name in ("vmem_capacity_bytes", "vmem_size_bytes", "vmem_bytes"):
            cap = getattr(info, name, None)
            if cap:
                return int(cap)
    except Exception:
        pass
    return 64 << 20


def _choose_tiles(T, H, I, x_itemsize, w_itemsize, block_tokens, block_inter):
    """Pick (tm, ti, vmem_limit) that fit the current chip's VMEM."""
    cap = _vmem_capacity_bytes()
    budget = int(cap * 0.80)              # headroom for Mosaic internal scratch
    small_vmem = cap <= (80 << 20)        # v7x (64 MiB) vs v5e/v6e (128 MiB)

    if block_tokens is None:
        block_tokens = 512 if small_vmem else 1024
    if block_inter is None:
        block_inter = 256 if small_vmem else 512

    # Token tile: multiple of 32 (covers f32/bf16/int8 sublane packing), capped by T.
    tm = max(32, min(_round_up(block_tokens, 32), _round_up(T, 32)))

    # Intermediate tile: multiple of 128 that divides I (I % 128 == 0 asserted).
    ti = max(128, min((block_inter // 128) * 128, I))
    while I % ti != 0:
        ti -= 128

    def vmem_use(tm_, ti_):
        w = 2 * (H * 2 * ti_ + ti_ * H) * w_itemsize     # packed gate_up + down, 2-deep
        a = 2 * tm_ * H * x_itemsize                     # x tile (double-buffered)
        o = 2 * tm_ * H * x_itemsize                     # out tile (double-buffered)
        acc = tm_ * H * 4                                # resident f32 accumulator
        return w + a + o + acc

    # Over budget: shrink ti first (weight reuse lives in tm), then tm.
    while vmem_use(tm, ti) > budget and ti > 128:
        nt = ti - 128
        while nt > 128 and I % nt != 0:
            nt -= 128
        ti = nt
    while vmem_use(tm, ti) > budget and tm > 32:
        tm = max(32, _round_up(tm // 2, 32))

    vmem_limit = max(32 << 20,
                     min(int(cap * 0.85), int(vmem_use(tm, ti) * 1.2) + (4 << 20)))
    return tm, ti, vmem_limit


def pack_gate_up_weight(w_gate_up, ti):
    """Re-layout the merged [H, 2I] gate_up weight into per-k contiguous blocks
    [num_k, H, 2*ti] (gate block k adjacent to its up block).  In a serving
    stack this is done ONCE at weight-load time, not per forward call."""
    H, two_I = w_gate_up.shape
    I = two_I // 2
    num_k = I // ti
    gate = w_gate_up[:, :I].reshape(H, num_k, ti)
    up = w_gate_up[:, I:].reshape(H, num_k, ti)
    packed = jnp.concatenate([gate, up], axis=-1)        # [H, num_k, 2*ti]
    return jnp.transpose(packed, (1, 0, 2))              # [num_k, H, 2*ti]


def _mlp_kernel(x_ref, wgu_ref, wd_ref, o_ref, acc_ref, *, ti):
    # x_ref:   (tm, H)      activation tile (resident along k)
    # wgu_ref: (H, 2*ti)    packed gate||up weight block for this k
    # wd_ref:  (ti, H)      down-proj weight block for this k
    # o_ref:   (tm, H)      output tile (resident along k)
    # acc_ref: (tm, H) f32  accumulator (VMEM scratch, resident along k)
    k = pl.program_id(1)

    @pl.when(k == 0)
    def _():
        acc_ref[...] = jnp.zeros_like(acc_ref)

    x = x_ref[...]
    # Single MXU dot for gate and up; split at the lane-aligned column ti.
    gu = jnp.dot(x, wgu_ref[...], preferred_element_type=jnp.float32)    # (tm, 2*ti)
    gate = gu[:, :ti]
    up = gu[:, ti:]

    # SiluAndMul in f32 on the (tm, ti) slab (logistic lands on the idle EUP slot).
    act = (gate * jax.lax.logistic(gate)) * up

    # Down-projection partial sum for this intermediate slice.
    acc_ref[...] += jnp.dot(act.astype(wd_ref.dtype), wd_ref[...],
                            preferred_element_type=jnp.float32)           # (tm, H)

    @pl.when(k == pl.num_programs(1) - 1)
    def _():
        o_ref[...] = acc_ref[...].astype(o_ref.dtype)


def deepseek_v2_mlp(x, w_gate_up, w_down, *, block_tokens=None, block_inter=None,
                    compute_dtype=None):
    """x: [T, H]; w_gate_up: [H, 2*I]; w_down: [I, H] -> [T, H].

    compute_dtype: optionally cast inputs (e.g. to bf16) before the kernel;
    accumulation stays f32 inside.  Output keeps x's original dtype.
    """
    if x.shape[0] == 0:
        # mirrors the `tp_size == 1 and x.shape[0] == 0` early return
        return x

    T, H = x.shape
    two_I = w_gate_up.shape[1]
    I = two_I // 2
    assert w_gate_up.shape == (H, 2 * I)
    assert w_down.shape == (I, H)
    assert H % 128 == 0, "hidden_size must be a multiple of 128 (lane width)"
    assert I % 128 == 0, "intermediate_size must be a multiple of 128"

    out_dtype = x.dtype
    if compute_dtype is not None:
        x = x.astype(compute_dtype)
        w_gate_up = w_gate_up.astype(compute_dtype)
        w_down = w_down.astype(compute_dtype)

    xbytes = jnp.dtype(x.dtype).itemsize
    wbytes = jnp.dtype(w_gate_up.dtype).itemsize
    tm, ti, vmem_limit = _choose_tiles(T, H, I, xbytes, wbytes,
                                       block_tokens, block_inter)
    num_k = I // ti
    num_t = pl.cdiv(T, tm)
    grid = (num_t, num_k)

    # TODO(synk): in a real serving stack pack once at weight-load time; also
    # TODO(synk): v7x decode (num_t == 1) could split the k axis across the two
    # TensorCores with per-core partial accumulators to use both DMA engines.
    wgu_packed = pack_gate_up_weight(w_gate_up, ti)      # [num_k, H, 2*ti]

    cost = pl.CostEstimate(
        flops=6 * T * H * I,
        transcendentals=T * I,
        bytes_accessed=(T * H * xbytes
                        + num_t * 3 * H * I * wbytes     # weights re-streamed per token tile
                        + T * H * jnp.dtype(out_dtype).itemsize))

    return pl.pallas_call(
        functools.partial(_mlp_kernel, ti=ti),
        out_shape=jax.ShapeDtypeStruct((T, H), out_dtype),
        grid_spec=pltpu.PrefetchScalarGridSpec(
            num_scalar_prefetch=0,
            grid=grid,
            in_specs=[
                pl.BlockSpec((tm, H), lambda i, k: (i, 0)),                # x tile
                pl.BlockSpec((None, H, 2 * ti), lambda i, k: (k, 0, 0)),   # gate||up block
                pl.BlockSpec((ti, H), lambda i, k: (k, 0)),                # down block
            ],
            out_specs=pl.BlockSpec((tm, H), lambda i, k: (i, 0)),          # resident along k
            scratch_shapes=[pltpu.VMEM((tm, H), jnp.float32)],
        ),
        compiler_params=pltpu.CompilerParams(
            dimension_semantics=("parallel", "arbitrary"),
            vmem_limit_bytes=vmem_limit,
        ),
        cost_estimate=cost,
    )(x, wgu_packed, w_down)


def _reference(x, w_gate_up, w_down):
    gate_up = jnp.dot(x.astype(jnp.float32), w_gate_up.astype(jnp.float32))
    I = w_down.shape[0]
    gate, up = gate_up[:, :I], gate_up[:, I:]
    h = jax.nn.silu(gate) * up
    return jnp.dot(h, w_down.astype(jnp.float32)).astype(x.dtype)


if __name__ == "__main__":
    key = jax.random.PRNGKey(0)
    kx, kg, kd, kx2 = jax.random.split(key, 4)

    hidden_size = 256
    intermediate_size = 512

    w_gate_up = (
        jax.random.normal(kg, (hidden_size, 2 * intermediate_size), dtype=jnp.float32)
        * (1.0 / hidden_size ** 0.5)
    )
    w_down = (
        jax.random.normal(kd, (intermediate_size, hidden_size), dtype=jnp.float32)
        * (1.0 / intermediate_size ** 0.5)
    )

    # Test 1: ragged small T (no pad/slice path, single partial token tile),
    # block_inter=128 forces num_k=4 to exercise the k accumulation.
    x1 = jax.random.normal(kx, (20, hidden_size), dtype=jnp.float32)
    out1 = jax.block_until_ready(deepseek_v2_mlp(x1, w_gate_up, w_down, block_inter=128))
    ref1 = _reference(x1, w_gate_up, w_down)
    assert out1.shape == x1.shape
    assert jnp.allclose(out1, ref1, atol=2e-4, rtol=2e-4), (
        float(jnp.max(jnp.abs(out1 - ref1))))

    # Test 2: prefill-sized ragged T with multiple token tiles + ragged edge block.
    x2 = jax.random.normal(kx2, (300, hidden_size), dtype=jnp.float32)
    out2 = jax.block_until_ready(deepseek_v2_mlp(x2, w_gate_up, w_down, block_tokens=128))
    ref2 = _reference(x2, w_gate_up, w_down)
    assert out2.shape == x2.shape
    assert jnp.allclose(out2, ref2, atol=2e-4, rtol=2e-4), (
        float(jnp.max(jnp.abs(out2 - ref2))))

    # Test 3: bf16 weights/activations (production dtype), auto-selected tiles.
    out3 = jax.block_until_ready(
        deepseek_v2_mlp(x2.astype(jnp.bfloat16),
                        w_gate_up.astype(jnp.bfloat16),
                        w_down.astype(jnp.bfloat16)))
    ref3 = _reference(x2.astype(jnp.bfloat16),
                      w_gate_up.astype(jnp.bfloat16),
                      w_down.astype(jnp.bfloat16))
    assert jnp.allclose(out3.astype(jnp.float32), ref3.astype(jnp.float32),
                        atol=5e-2, rtol=5e-2), (
        float(jnp.max(jnp.abs(out3.astype(jnp.float32) - ref3.astype(jnp.float32)))))

    print("KERNEL_OK")
</pallas_src>

<mosaic_0001>
module attributes {stable_mosaic.version = 11 : i64} {
  func.func @_mlp_kernel(%arg0: i32, %arg1: i32, %arg2: memref<32x256xf32, #tpu.memory_space<vmem>>, %arg3: memref<1x256x256xf32, #tpu.memory_space<vmem>>, %arg4: memref<128x256xf32, #tpu.memory_space<vmem>>, %arg5: memref<32x256xf32, #tpu.memory_space<vmem>>, %arg6: memref<32x256xf32, #tpu.memory_space<vmem>>) attributes {dimension_semantics = [#tpu.dimension_semantics<parallel>, #tpu.dimension_semantics<arbitrary>], iteration_bounds = array<i64: 1, 4>, scalar_prefetch = 0 : i64, scratch_operands = 1 : i64, tpu.core_type = #tpu.core_type<tc>, window_params = [{transform_indices = @transform_0, window_bounds = array<i64: 32, 256>}, {transform_indices = @transform_1, window_bounds = array<i64: 1, 256, 256>}, {transform_indices = @transform_2, window_bounds = array<i64: 128, 256>}, {transform_indices = @transform_3, window_bounds = array<i64: 32, 256>}]} {
    %c0_i32 = arith.constant 0 : i32
    %0 = arith.cmpi eq, %arg1, %c0_i32 : i32
    %1 = arith.extui %0 : i1 to i32
    %c0_i32_0 = arith.constant 0 : i32
    %2 = arith.cmpi ne, %1, %c0_i32_0 : i32
    scf.if %2 {
      %cst_14 = arith.constant 0.000000e+00 : f32
      %24 = vector.broadcast %cst_14 : f32 to vector<32x256xf32>
      %c0_15 = arith.constant 0 : index
      %c0_16 = arith.constant 0 : index
      %25 = vector.load %arg6[%c0_15, %c0_16] : memref<32x256xf32, #tpu.memory_space<vmem>>, vector<32x256xf32>
      tpu.vector_store %arg6[%c0_15, %c0_16], %24 {strides = array<i32>} : memref<32x256xf32, #tpu.memory_space<vmem>>, vector<32x256xf32>,
    } else {
    }
    %c0 = arith.constant 0 : index
    %c0_1 = arith.constant 0 : index
    %3 = vector.load %arg2[%c0, %c0_1] : memref<32x256xf32, #tpu.memory_space<vmem>>, vector<32x256xf32>
    %c0_2 = arith.constant 0 : index
    %c0_3 = arith.constant 0 : index
    %c0_4 = arith.constant 0 : index
    %4 = vector.load %arg3[%c0_2, %c0_3, %c0_4] : memref<1x256x256xf32, #tpu.memory_space<vmem>>, vector<1x256x256xf32>
    %5 = vector.shape_cast %4 : vector<1x256x256xf32> to vector<256x256xf32>
    %cst = arith.constant dense<0.000000e+00> : vector<32x256xf32>
    %6 = tpu.matmul %3, %5, %cst {dimension_numbers = #tpu.dot_dimension_numbers<[1], [0], [0], [1], [0, 0, 1, 1], [], []>} : vector<32x256xf32>, vector<256x256xf32>, vector<32x256xf32> -> vector<32x256xf32>
    %7 = vector.extract_strided_slice %6 {offsets = [0, 0], sizes = [32, 128], strides = [1, 1]} : vector<32x256xf32> to vector<32x128xf32>
    %8 = vector.extract_strided_slice %6 {offsets = [0, 128], sizes = [32, 128], strides = [1, 1]} : vector<32x256xf32> to vector<32x128xf32>
    %9 = arith.negf %7 : vector<32x128xf32>
    %10 = math.exp %9 : vector<32x128xf32>
    %cst_5 = arith.constant 1.000000e+00 : f32
    %11 = vector.broadcast %cst_5 : f32 to vector<32x128xf32>
    %12 = arith.addf %11, %10 : vector<32x128xf32>
    %13 = arith.divf %11, %12 : vector<32x128xf32>
    %14 = arith.mulf %7, %13 : vector<32x128xf32>
    %15 = arith.mulf %14, %8 : vector<32x128xf32>
    %c0_6 = arith.constant 0 : index
    %c0_7 = arith.constant 0 : index
    %16 = vector.load %arg6[%c0_6, %c0_7] : memref<32x256xf32, #tpu.memory_space<vmem>>, vector<32x256xf32>
    %c0_8 = arith.constant 0 : index
    %c0_9 = arith.constant 0 : index
    %17 = vector.load %arg4[%c0_8, %c0_9] : memref<128x256xf32, #tpu.memory_space<vmem>>, vector<128x256xf32>
    %cst_10 = arith.constant dense<0.000000e+00> : vector<32x256xf32>
    %18 = tpu.matmul %15, %17, %cst_10 {dimension_numbers = #tpu.dot_dimension_numbers<[1], [0], [0], [1], [0, 0, 1, 1], [], []>} : vector<32x128xf32>, vector<128x256xf32>, vector<32x256xf32> -> vector<32x256xf32>
    %19 = arith.addf %16, %18 : vector<32x256xf32>
    %c0_11 = arith.constant 0 : index
    %c0_12 = arith.constant 0 : index
    %20 = vector.load %arg6[%c0_11, %c0_12] : memref<32x256xf32, #tpu.memory_space<vmem>>, vector<32x256xf32>
    tpu.vector_store %arg6[%c0_11, %c0_12], %19 {strides = array<i32>} : memref<32x256xf32, #tpu.memory_space<vmem>>, vector<32x256xf32>,
    %c3_i32 = arith.constant 3 : i32
    %21 = arith.cmpi eq, %arg1, %c3_i32 : i32
    %22 = arith.extui %21 : i1 to i32
    %c0_i32_13 = arith.constant 0 : i32
    %23 = arith.cmpi ne, %22, %c0_i32_13 : i32
    scf.if %23 {
      %c0_14 = arith.constant 0 : index
      %c0_15 = arith.constant 0 : index
      %24 = vector.load %arg6[%c0_14, %c0_15] : memref<32x256xf32, #tpu.memory_space<vmem>>, vector<32x256xf32>
      %c0_16 = arith.constant 0 : index
      %c0_17 = arith.constant 0 : index
      %25 = vector.load %arg5[%c0_16, %c0_17] : memref<32x256xf32, #tpu.memory_space<vmem>>, vector<32x256xf32>
      tpu.vector_store %arg5[%c0_16, %c0_17], %24 {strides = array<i32>} : memref<32x256xf32, #tpu.memory_space<vmem>>, vector<32x256xf32>,
    } else {
    }
    return
  }
  func.func @transform_0(%arg0: i32, %arg1: i32) -> (i32, i32) {
    %c0_i32 = arith.constant 0 : i32
    %c0_i32_0 = arith.constant 0 : i32
    return %arg0, %c0_i32 : i32, i32
  }
  func.func @transform_1(%arg0: i32, %arg1: i32) -> (i32, i32, i32) {
    %c0_i32 = arith.constant 0 : i32
    %c0_i32_0 = arith.constant 0 : i32
    %c0_i32_1 = arith.constant 0 : i32
    return %arg1, %c0_i32, %c0_i32_0 : i32, i32, i32
  }
  func.func @transform_2(%arg0: i32, %arg1: i32) -> (i32, i32) {
    %c0_i32 = arith.constant 0 : i32
    %c0_i32_0 = arith.constant 0 : i32
    return %arg1, %c0_i32 : i32, i32
  }
  func.func @transform_3(%arg0: i32, %arg1: i32) -> (i32, i32) {
    %c0_i32 = arith.constant 0 : i32
    %c0_i32_0 = arith.constant 0 : i32
    return %arg0, %c0_i32 : i32, i32
  }
}

</mosaic_0001>

<llo_original>
// kernel: tpu_custom_call.1
$region0: #{tpu_custom_call.1}
  #allocation0 [shape = 'u32[]', space=smem, size = 0x4, offset = 0x4, fixed_abs, tag = 'smem constant byte address 0x4 - core index']
  #allocation1 [shape = 'u32[72,128]{1,0:T(1,128)}', space=vmem, size = 0x9000, scoped, tag = 'internal scratch']
  #allocation2 [shape = 'f32[32,256]{1,0:T(8,128)}', space=vmem, size = 0x8000, scoped, tag = 'scratch operand']
  %s0 = inlined_call_operand.hbm [shape: f32[20,256], index: 0, kind: input, shape index: {}]
  %s1 = inlined_call_operand.hbm [shape: f32[4,256,256], index: 1, kind: input, shape index: {}]
  %s2 = inlined_call_operand.hbm [shape: f32[512,256], index: 2, kind: input, shape index: {}]
  %s3 = inlined_call_operand.hbm [shape: f32[20,256], index: 3, kind: output, shape index: {}]
  %s4 = sld [smem:[#allocation0]]
  $region65: #{tpu_custom_call.1} parent=0
    _
  %s6 = ssub.s32 1, %s4
  %s7 = scalar_select 0, %s6, %s4
  $region1: #{tpu_custom_call.1} parent=0
    #allocation3 [shape = 'u8[32768]{0}', space=vmem, size = 0x8000, scoped, tag = 'input window, operand 0, single buffered']
    #allocation4 [shape = 's32[2]{0}', space=sflag, size = 0x8, scoped, tag = 'scoped memory for tpu_custom_call.1']
    #allocation5 [shape = 's32[2]{0}', space=sflag, size = 0x8, scoped, tag = 'scoped memory for tpu_custom_call.1']
    #allocation6 [shape = 'u8[524288]{0}', space=vmem, size = 0x80000, scoped, tag = 'input window, operand 1']
    #allocation7 [shape = 's32[2]{0}', space=sflag, size = 0x8, scoped, tag = 'scoped memory for tpu_custom_call.1']
    #allocation8 [shape = 'u8[262144]{0}', space=vmem, size = 0x40000, scoped, tag = 'input window, operand 2']
    #allocation9 [shape = 'u8[32768]{0}', space=vmem, size = 0x8000, scoped, tag = 'output window, operand 0, single buffered']
    %8 = vsyncpa [#allocation4], 0
    %9 = vsyncpa [#allocation7], 0
    %s10 = scalar_lea.sflag [#allocation7], 1
    %11 = vsyncpa %s10, 0
    %12 = vsyncpa [#allocation5], 0
    loop: start=0, step=1, limit=6
    $region2: #{tpu_custom_call.1} parent=1 // loop_pre_header
      _
    $region3: #{tpu_custom_call.1} parent=1 // loop_header
      %s14 = sphi 0, %s18
      %p15 = scmp.ge.s32.totalorder %s14, 6
      %s21 = sphi 0, %s33
      %s22 = sphi 0, %s29
      %s23 = sphi 0, %s21
      %s24 = sphi 0, %s22
      %s25 = sphi 0, %s23
      %s26 = sphi 0, %s24
      %s36 = sphi 0, %s38
      %s39 = sphi 0, %s36
      %s40 = sphi 0, %s39
      %s56 = sphi 0, %s40
      %s62 = sphi 0, %s64
      %s65 = sphi 0, %s62
      %s66 = sphi 0, %s65
      %s82 = sphi 0, %s66
      %s88 = sphi 0, %s90
      %s91 = sphi 0, %s88
      %s92 = sphi 0, %s91
      %s108 = sphi 0, %s92
      %s114 = sphi 0, %s116
      %s117 = sphi 0, %s114
      %s118 = sphi 0, %s117
      %s134 = sphi 0, %s118
    $region4: #{tpu_custom_call.1} parent=1 // loop_header_branch
      %17 = sbr.rel (%p15) target = $region8
    $region5: #{tpu_custom_call.1} parent=1 // loop_body
      %s19 = ssub.s32 %s14, 1
      %s20 = ssub.s32 %s14, 2
      %s27 = sadd.s32 1, %s22
      %p28 = scmp.ge.s32.totalorder %s27, 4
      %s29 = scalar_select %p28, 0, %s27
      %s30 = sadd.s32 1, %s21
      %s31 = scalar_select %p28, %s30, %s21
      %p32 = scmp.ge.s32.totalorder %s31, 1
      %s33 = scalar_select %p32, 0, %s31
      %s34 = ssub.s32 %s21, %s33
      %p35 = scmp.eq.s32.totalorder %s34, 0
      %s37 = sadd.s32 %s36, 1
      %s38 = scalar_select %p35, %s36, %s37
      %p41 = pneg %p35
      %p42 = scmp.eq.s32.totalorder %s14, 3
      %p43 = por %p41, %p42
      %p44 = scmp.ne.s32.totalorder %s36, %s39
      %p45 = scmp.eq.s32.totalorder %s14, 0
      %p46 = por %p44, %p45
      %p47 = scmp.ne.s32.totalorder %s36, %s39
      %p48 = scmp.eq.s32.totalorder %s19, 3
      %p49 = por %p47, %p48
      %p50 = scmp.ne.s32.totalorder %s39, %s40
      %p51 = scmp.eq.s32.totalorder %s19, 0
      %p52 = por %p50, %p51
      %p53 = scmp.ne.s32.totalorder %s39, %s40
      %p54 = scmp.eq.s32.totalorder %s20, 3
      %p55 = por %p53, %p54
      %p57 = scmp.ne.s32.totalorder %s40, %s56
      %p58 = scmp.eq.s32.totalorder %s20, 0
      %p59 = por %p57, %p58
      %s60 = ssub.s32 %s22, %s29
      %p61 = scmp.eq.s32.totalorder %s60, 0
      %s63 = sadd.s32 %s62, 1
      %s64 = scalar_select %p61, %s62, %s63
      %p67 = pneg %p61
      %p68 = scmp.eq.s32.totalorder %s14, 3
      %p69 = por %p67, %p68
      %p70 = scmp.ne.s32.totalorder %s62, %s65
      %p71 = scmp.eq.s32.totalorder %s14, 0
      %p72 = por %p70, %p71
      %p73 = scmp.ne.s32.totalorder %s62, %s65
      %p74 = scmp.eq.s32.totalorder %s19, 3
      %p75 = por %p73, %p74
      %p76 = scmp.ne.s32.totalorder %s65, %s66
      %p77 = scmp.eq.s32.totalorder %s19, 0
      %p78 = por %p76, %p77
      %p79 = scmp.ne.s32.totalorder %s65, %s66
      %p80 = scmp.eq.s32.totalorder %s20, 3
      %p81 = por %p79, %p80
      %p83 = scmp.ne.s32.totalorder %s66, %s82
      %p84 = scmp.eq.s32.totalorder %s20, 0
      %p85 = por %p83, %p84
      %s86 = ssub.s32 %s22, %s29
      %p87 = scmp.eq.s32.totalorder %s86, 0
      %s89 = sadd.s32 %s88, 1
      %s90 = scalar_select %p87, %s88, %s89
      %p93 = pneg %p87
      %p94 = scmp.eq.s32.totalorder %s14, 3
      %p95 = por %p93, %p94
      %p96 = scmp.ne.s32.totalorder %s88, %s91
      %p97 = scmp.eq.s32.totalorder %s14, 0
      %p98 = por %p96, %p97
      %p99 = scmp.ne.s32.totalorder %s88, %s91
      %p100 = scmp.eq.s32.totalorder %s19, 3
      %p101 = por %p99, %p100
      %p102 = scmp.ne.s32.totalorder %s91, %s92
      %p103 = scmp.eq.s32.totalorder %s19, 0
      %p104 = por %p102, %p103
      %p105 = scmp.ne.s32.totalorder %s91, %s92
      %p106 = scmp.eq.s32.totalorder %s20, 3
      %p107 = por %p105, %p106
      %p109 = scmp.ne.s32.totalorder %s92, %s108
      %p110 = scmp.eq.s32.totalorder %s20, 0
      %p111 = por %p109, %p110
      %s112 = ssub.s32 %s21, %s33
      %p113 = scmp.eq.s32.totalorder %s112, 0
      %s115 = sadd.s32 %s114, 1
      %s116 = scalar_select %p113, %s114, %s115
      %p119 = pneg %p113
      %p120 = scmp.eq.s32.totalorder %s14, 3
      %p121 = por %p119, %p120
      %p122 = scmp.ne.s32.totalorder %s114, %s117
      %p123 = scmp.eq.s32.totalorder %s14, 0
      %p124 = por %p122, %p123
      %p125 = scmp.ne.s32.totalorder %s114, %s117
      %p126 = scmp.eq.s32.totalorder %s19, 3
      %p127 = por %p125, %p126
      %p128 = scmp.ne.s32.totalorder %s117, %s118
      %p129 = scmp.eq.s32.totalorder %s19, 0
      %p130 = por %p128, %p129
      %p131 = scmp.ne.s32.totalorder %s117, %s118
      %p132 = scmp.eq.s32.totalorder %s20, 3
      %p133 = por %p131, %p132
      %p135 = scmp.ne.s32.totalorder %s118, %s134
      %p136 = scmp.eq.s32.totalorder %s20, 0
      %p137 = por %p135, %p136
      %p138 = scmp.le.s32.totalorder 1, %s14
      %p139 = scmp.lt.s32.totalorder %s14, 5
      %p140 = pnand %p138, %p139
      %p141 = pneg %p140
      // Predicated region
      $region9: #{tpu_custom_call.1} parent=5 // pred_check
        _
      $region10: #{tpu_custom_call.1} parent=5 // pred_check_branch
        %143 = sbr.rel (%p140) target = $region12
      $region11: #{tpu_custom_call.1} parent=5 // pred_region
        %s144 = ssub.s32 %s14, 1
        // Predicated region
        $region13: #{tpu_custom_call.1} parent=11 // pred_check
          %p145 = pneg %p52
        $region14: #{tpu_custom_call.1} parent=11 // pred_check_branch
          %147 = sbr.rel (%p145) target = $region16
        $region15: #{tpu_custom_call.1} parent=11 // pred_region
          %s148 = smul.u32 4, %s23
          %s149 = ssub.s32 3, %s148
          %s150 = smul.u32 8, %s149
          %s151 = smul.u32 %s150, 2
          %s152 = ssub.s32 64, %s151
          %s153 = sshll.u32 %s152, 4
          %154 = vsyncadd [#allocation4], %s153
          %p155 = scmp.ne.s32.totalorder 0, %s151
          %s156 = smul.addr %s148, 2
          %s157 = smul.addr %s156, 8
          %s158 = scalar_lea.hbm %s0, %s157
          %s159 = smul.u32 16, %s149
          %s160 = sshll.u32 %s158, 4
          %s161 = int_to_ptr.hbm [resolvable:$true] %s160
          %s162 = sshll.u32 [#allocation3], 4
          %s163 = int_to_ptr.vmem [resolvable:$true] %s162
          %s164 = sshll.u32 %s159, 4
          %168 = dma.hbm_to_vmem [thread:$0]  (%p155), %s161, %s164, %s163, [#allocation4], 256, 256, 16
        $region16: #{tpu_custom_call.1} parent=11 // pred_fallthru
          _
      $region12: #{tpu_custom_call.1} parent=5 // pred_fallthru
        _
      %p169 = scmp.lt.s32.totalorder %s14, 4
      // Predicated region
      $region17: #{tpu_custom_call.1} parent=5 // pred_check
        %p170 = pneg %p169
      $region18: #{tpu_custom_call.1} parent=5 // pred_check_branch
        %172 = sbr.rel (%p170) target = $region20
      $region19: #{tpu_custom_call.1} parent=5 // pred_region
        // Predicated region
        $region21: #{tpu_custom_call.1} parent=19 // pred_check
          %p173 = pneg %p72
        $region22: #{tpu_custom_call.1} parent=19 // pred_check_branch
          %175 = sbr.rel (%p173) target = $region24
        $region23: #{tpu_custom_call.1} parent=19 // pred_region
          %s176 = sand.u32 %s14, 1
          %s177 = scalar_lea.sflag [#allocation7], %s176
          %s178 = sand.u32 %s62, 1
          %s179 = smul.addr %s178, 512
          %s180 = scalar_lea.vmem [#allocation6], %s179
          %182 = vsyncadd %s177, 0
          %s183 = smul.addr %s22, 64
          %s184 = smul.addr %s183, 8
          %s185 = scalar_lea.hbm %s1, %s184
          %s186 = sshll.u32 %s185, 4
          %s187 = int_to_ptr.hbm [resolvable:$true] %s186
          %s188 = sshll.u32 %s180, 4
          %s189 = int_to_ptr.vmem [resolvable:$true] %s188
          %194 = dma.hbm_to_vmem [thread:$0]  %s187, 8192, %s189, %s177, 256, 256, 16
        $region24: #{tpu_custom_call.1} parent=19 // pred_fallthru
          _
        // Predicated region
        $region25: #{tpu_custom_call.1} parent=19 // pred_check
          %p195 = pneg %p98
        $region26: #{tpu_custom_call.1} parent=19 // pred_check_branch
          %197 = sbr.rel (%p195) target = $region28
        $region27: #{tpu_custom_call.1} parent=19 // pred_region
          %s198 = sand.u32 %s14, 1
          %s199 = scalar_lea.sflag [#allocation7], %s198
          %s200 = sand.u32 %s88, 1
          %s201 = smul.addr %s200, 256
          %s202 = scalar_lea.vmem [#allocation8], %s201
          %s203 = smul.u32 16, %s22
          %205 = vsyncadd %s199, 0
          %s206 = smul.addr %s203, 2
          %s207 = smul.addr %s206, 8
          %s208 = scalar_lea.hbm %s2, %s207
          %s209 = sshll.u32 %s208, 4
          %s210 = int_to_ptr.hbm [resolvable:$true] %s209
          %s211 = sshll.u32 %s202, 4
          %s212 = int_to_ptr.vmem [resolvable:$true] %s211
          %217 = dma.hbm_to_vmem [thread:$0]  %s210, 4096, %s212, %s199, 256, 256, 16
        $region28: #{tpu_custom_call.1} parent=19 // pred_fallthru
          _
      $region20: #{tpu_custom_call.1} parent=5 // pred_fallthru
        _
      %p218 = scmp.le.s32.totalorder 1, %s14
      %p219 = scmp.lt.s32.totalorder %s14, 5
      %p220 = pnand %p218, %p219
      %p221 = pneg %p220
      // Predicated region
      $region29: #{tpu_custom_call.1} parent=5 // pred_check
        _
      $region30: #{tpu_custom_call.1} parent=5 // pred_check_branch
        %223 = sbr.rel (%p220) target = $region32
      $region31: #{tpu_custom_call.1} parent=5 // pred_region
        %s224 = ssub.s32 %s14, 1
        // Predicated region
        $region33: #{tpu_custom_call.1} parent=31 // pred_check
          %p225 = pneg %p52
        $region34: #{tpu_custom_call.1} parent=31 // pred_check_branch
          %227 = sbr.rel (%p225) target = $region36
        $region35: #{tpu_custom_call.1} parent=31 // pred_region
          %229 = dma.done [#allocation4], 1024
        $region36: #{tpu_custom_call.1} parent=31 // pred_fallthru
          _
        %s230 = sand.u32 %s19, 1
        %s231 = scalar_lea.sflag [#allocation7], %s230
        %s232 = sand.u32 %s65, 1
        %s233 = smul.addr %s232, 512
        %s234 = scalar_lea.vmem [#allocation6], %s233
        // Predicated region
        $region37: #{tpu_custom_call.1} parent=31 // pred_check
          %p235 = pneg %p78
        $region38: #{tpu_custom_call.1} parent=31 // pred_check_branch
          %237 = sbr.rel (%p235) target = $region40
        $region39: #{tpu_custom_call.1} parent=31 // pred_region
          %239 = dma.done %s231, 8192
        $region40: #{tpu_custom_call.1} parent=31 // pred_fallthru
          _
        %s240 = sand.u32 %s19, 1
        %s241 = scalar_lea.sflag [#allocation7], %s240
        %s242 = sand.u32 %s91, 1
        %s243 = smul.addr %s242, 256
        %s244 = scalar_lea.vmem [#allocation8], %s243
        // Predicated region
        $region41: #{tpu_custom_call.1} parent=31 // pred_check
          %p245 = pneg %p104
        $region42: #{tpu_custom_call.1} parent=31 // pred_check_branch
          %247 = sbr.rel (%p245) target = $region44
        $region43: #{tpu_custom_call.1} parent=31 // pred_region
          %249 = dma.done %s241, 4096
        $region44: #{tpu_custom_call.1} parent=31 // pred_fallthru
          _
        %p250 = pneg %p52
        %p251 = pneg %p49
        %s252 = sand.u32 %s19, 1
        %s253 = scalar_lea.sflag [#allocation7], %s252
        %s254 = sand.u32 %s65, 1
        %s255 = smul.addr %s254, 512
        %s256 = scalar_lea.vmem [#allocation6], %s255
        %p257 = pneg %p78
        %p258 = pneg %p75
        %s259 = sand.u32 %s19, 1
        %s260 = scalar_lea.sflag [#allocation7], %s259
        %s261 = sand.u32 %s91, 1
        %s262 = smul.addr %s261, 256
        %s263 = scalar_lea.vmem [#allocation8], %s262
        %p264 = pneg %p104
        %p265 = pneg %p101
        %p266 = pneg %p130
        %p267 = pneg %p127
        %s268 = smul.u32 4, %s23
        %s269 = ssub.s32 3, %s268
        %s270 = smul.u32 8, %s269
        %s271 = smul.u32 %s270, 2
        %s272 = smul.u32 16, %s24
        %s273 = smul.u32 4, %s23
        %s274 = ssub.s32 3, %s273
        %s275 = smul.u32 8, %s274
        %s276 = smul.u32 %s275, 2
        %p277 = scmp.eq.s32.totalorder %s24, 0
        // Predicated region
        $region45: #{tpu_custom_call.1} parent=31 // pred_check
          %p278 = pneg %p277
        $region46: #{tpu_custom_call.1} parent=31 // pred_check_branch
          %280 = sbr.rel (%p278) target = $region48
        $region47: #{tpu_custom_call.1} parent=31 // pred_region
          %281 = vst [vmem:[#allocation2] sm:$0xff] 0.0
          %282 = vst [vmem:[#allocation2 + $0x8] sm:$0xff] 0.0
          %283 = vst [vmem:[#allocation2 + $0x10] sm:$0xff] 0.0
          %284 = vst [vmem:[#allocation2 + $0x18] sm:$0xff] 0.0
          %285 = vst [vmem:[#allocation2 + $0x20] sm:$0xff] 0.0
          %286 = vst [vmem:[#allocation2 + $0x28] sm:$0xff] 0.0
          %287 = vst [vmem:[#allocation2 + $0x30] sm:$0xff] 0.0
          %288 = vst [vmem:[#allocation2 + $0x38] sm:$0xff] 0.0
        $region48: #{tpu_custom_call.1} parent=31 // pred_fallthru
          _
        %v289 = vld [vmem:[#allocation3] sm:$0xff]
        %v290 = vld [vmem:[#allocation3 + $0x8] sm:$0xff]
        %v291 = vld [vmem:[#allocation3 + $0x10] sm:$0xff]
        %v292 = vld [vmem:[#allocation3 + $0x18] sm:$0xff]
        %v293 = vld [vmem:[#allocation3 + $0x20] sm:$0xff]
        %v294 = vld [vmem:[#allocation3 + $0x28] sm:$0xff]
        %v295 = vld [vmem:[#allocation3 + $0x30] sm:$0xff]
        %v296 = vld [vmem:[#allocation3 + $0x38] sm:$0xff]
        %v297 = vld [vmem:[%s234] sm:$0xff]
        %v298 = vld [vmem:[%s234 + $0x8] sm:$0xff]
        %v299 = vld [vmem:[%s234 + $0x10] sm:$0xff]
        %v300 = vld [vmem:[%s234 + $0x18] sm:$0xff]
        %v301 = vld [vmem:[%s234 + $0x20] sm:$0xff]
        %v302 = vld [vmem:[%s234 + $0x28] sm:$0xff]
        %v303 = vld [vmem:[%s234 + $0x30] sm:$0xff]
        %v304 = vld [vmem:[%s234 + $0x38] sm:$0xff]
        %v305 = vld [vmem:[%s234 + $0x40] sm:$0xff]
        %v306 = vld [vmem:[%s234 + $0x48] sm:$0xff]
        %v307 = vld [vmem:[%s234 + $0x50] sm:$0xff]
        %v308 = vld [vmem:[%s234 + $0x58] sm:$0xff]
        %v309 = vld [vmem:[%s234 + $0x60] sm:$0xff]
        %v310 = vld [vmem:[%s234 + $0x68] sm:$0xff]
        %v311 = vld [vmem:[%s234 + $0x70] sm:$0xff]
        %v312 = vld [vmem:[%s234 + $0x78] sm:$0xff]
        %v313 = vld [vmem:[%s234 + $0x80] sm:$0xff]
        %v314 = vld [vmem:[%s234 + $0x88] sm:$0xff]
        %v315 = vld [vmem:[%s234 + $0x90] sm:$0xff]
        %v316 = vld [vmem:[%s234 + $0x98] sm:$0xff]
        %v317 = vld [vmem:[%s234 + $0xa0] sm:$0xff]
        %v318 = vld [vmem:[%s234 + $0xa8] sm:$0xff]
        %v319 = vld [vmem:[%s234 + $0xb0] sm:$0xff]
        %v320 = vld [vmem:[%s234 + $0xb8] sm:$0xff]
        %v321 = vld [vmem:[%s234 + $0xc0] sm:$0xff]
        %v322 = vld [vmem:[%s234 + $0xc8] sm:$0xff]
        %v323 = vld [vmem:[%s234 + $0xd0] sm:$0xff]
        %v324 = vld [vmem:[%s234 + $0xd8] sm:$0xff]
        %v325 = vld [vmem:[%s234 + $0xe0] sm:$0xff]
        %v326 = vld [vmem:[%s234 + $0xe8] sm:$0xff]
        %v327 = vld [vmem:[%s234 + $0xf0] sm:$0xff]
        %v328 = vld [vmem:[%s234 + $0xf8] sm:$0xff]
        %v329 = vld [vmem:[%s234 + $0x100] sm:$0xff]
        %v330 = vld [vmem:[%s234 + $0x108] sm:$0xff]
        %v331 = vld [vmem:[%s234 + $0x110] sm:$0xff]
        %v332 = vld [vmem:[%s234 + $0x118] sm:$0xff]
        %v333 = vld [vmem:[%s234 + $0x120] sm:$0xff]
        %v334 = vld [vmem:[%s234 + $0x128] sm:$0xff]
        %v335 = vld [vmem:[%s234 + $0x130] sm:$0xff]
        %v336 = vld [vmem:[%s234 + $0x138] sm:$0xff]
        %v337 = vld [vmem:[%s234 + $0x140] sm:$0xff]
        %v338 = vld [vmem:[%s234 + $0x148] sm:$0xff]
        %v339 = vld [vmem:[%s234 + $0x150] sm:$0xff]
        %v340 = vld [vmem:[%s234 + $0x158] sm:$0xff]
        %v341 = vld [vmem:[%s234 + $0x160] sm:$0xff]
        %v342 = vld [vmem:[%s234 + $0x168] sm:$0xff]
        %v343 = vld [vmem:[%s234 + $0x170] sm:$0xff]
        %v344 = vld [vmem:[%s234 + $0x178] sm:$0xff]
        %v345 = vld [vmem:[%s234 + $0x180] sm:$0xff]
        %v346 = vld [vmem:[%s234 + $0x188] sm:$0xff]
        %v347 = vld [vmem:[%s234 + $0x190] sm:$0xff]
        %v348 = vld [vmem:[%s234 + $0x198] sm:$0xff]
        %v349 = vld [vmem:[%s234 + $0x1a0] sm:$0xff]
        %v350 = vld [vmem:[%s234 + $0x1a8] sm:$0xff]
        %v351 = vld [vmem:[%s234 + $0x1b0] sm:$0xff]
        %v352 = vld [vmem:[%s234 + $0x1b8] sm:$0xff]
        %v353 = vld [vmem:[%s234 + $0x1c0] sm:$0xff]
        %v354 = vld [vmem:[%s234 + $0x1c8] sm:$0xff]
        %v355 = vld [vmem:[%s234 + $0x1d0] sm:$0xff]
        %v356 = vld [vmem:[%s234 + $0x1d8] sm:$0xff]
        %v357 = vld [vmem:[%s234 + $0x1e0] sm:$0xff]
        %v358 = vld [vmem:[%s234 + $0x1e8] sm:$0xff]
        %v359 = vld [vmem:[%s234 + $0x1f0] sm:$0xff]
        %v360 = vld [vmem:[%s234 + $0x1f8] sm:$0xff]
        %361 = vmatpush.msra.mxu0 %v327
        %362 = vmatpush.msra.mxu0 %v325
        %363 = vmatpush.msra.mxu0 %v323
        %364 = vmatpush.msra.mxu0 %v321
        %365 = vmatpush.msra.mxu0 %v319
        %366 = vmatpush.msra.mxu0 %v317
        %367 = vmatpush.msra.mxu0 %v315
        %368 = vmatpush.msra.mxu0 %v313
        %369 = vmatpush.msra.mxu0 %v311
        %370 = vmatpush.msra.mxu0 %v309
        %371 = vmatpush.msra.mxu0 %v307
        %372 = vmatpush.msra.mxu0 %v305
        %373 = vmatpush.msra.mxu0 %v303
        %374 = vmatpush.msra.mxu0 %v301
        %375 = vmatpush.msra.mxu0 %v299
        %376 = vmatpush.msra.mxu0 %v297
        %377 = vmatmul.f32.gmra.mxu0 %v289
        %v378 = vpop.f32.mrf.mxu0
        %v379 = vadd.f32 0.0, %v378
        %380 = vmatmul.f32.gmra.mxu0 %v291
        %v381 = vpop.f32.mrf.mxu0
        %v382 = vadd.f32 0.0, %v381
        %383 = vmatmul.f32.gmra.mxu0 %v293
        %v384 = vpop.f32.mrf.mxu0
        %v385 = vadd.f32 0.0, %v384
        %386 = vmatmul.f32.gmra.mxu0 %v295
        %v387 = vpop.f32.mrf.mxu0
        %v388 = vadd.f32 0.0, %v387
        %389 = vdwg.mxu0
        %390 = vmatpush.msra.mxu0 %v359
        %391 = vmatpush.msra.mxu0 %v357
        %392 = vmatpush.msra.mxu0 %v355
        %393 = vmatpush.msra.mxu0 %v353
        %394 = vmatpush.msra.mxu0 %v351
        %395 = vmatpush.msra.mxu0 %v349
        %396 = vmatpush.msra.mxu0 %v347
        %397 = vmatpush.msra.mxu0 %v345
        %398 = vmatpush.msra.mxu0 %v343
        %399 = vmatpush.msra.mxu0 %v341
        %400 = vmatpush.msra.mxu0 %v339
        %401 = vmatpush.msra.mxu0 %v337
        %402 = vmatpush.msra.mxu0 %v335
        %403 = vmatpush.msra.mxu0 %v333
        %404 = vmatpush.msra.mxu0 %v331
        %405 = vmatpush.msra.mxu0 %v329
        %406 = vmatmul.f32.gmra.mxu0 %v290
        %v407 = vpop.f32.mrf.mxu0
        %v408 = vadd.f32 %v379, %v407
        %409 = vmatmul.f32.gmra.mxu0 %v292
        %v410 = vpop.f32.mrf.mxu0
        %v411 = vadd.f32 %v382, %v410
        %412 = vmatmul.f32.gmra.mxu0 %v294
        %v413 = vpop.f32.mrf.mxu0
        %v414 = vadd.f32 %v385, %v413
        %415 = vmatmul.f32.gmra.mxu0 %v296
        %v416 = vpop.f32.mrf.mxu0
        %v417 = vadd.f32 %v388, %v416
        %418 = vdwg.mxu0
        %419 = vmatpush.msra.mxu0 %v328
        %420 = vmatpush.msra.mxu0 %v326
        %421 = vmatpush.msra.mxu0 %v324
        %422 = vmatpush.msra.mxu0 %v322
        %423 = vmatpush.msra.mxu0 %v320
        %424 = vmatpush.msra.mxu0 %v318
        %425 = vmatpush.msra.mxu0 %v316
        %426 = vmatpush.msra.mxu0 %v314
        %427 = vmatpush.msra.mxu0 %v312
        %428 = vmatpush.msra.mxu0 %v310
        %429 = vmatpush.msra.mxu0 %v308
        %430 = vmatpush.msra.mxu0 %v306
        %431 = vmatpush.msra.mxu0 %v304
        %432 = vmatpush.msra.mxu0 %v302
        %433 = vmatpush.msra.mxu0 %v300
        %434 = vmatpush.msra.mxu0 %v298
        %435 = vmatmul.f32.gmra.mxu0 %v289
        %v436 = vpop.f32.mrf.mxu0
        %v437 = vadd.f32 0.0, %v436
        %438 = vmatmul.f32.gmra.mxu0 %v291
        %v439 = vpop.f32.mrf.mxu0
        %v440 = vadd.f32 0.0, %v439
        %441 = vmatmul.f32.gmra.mxu0 %v293
        %v442 = vpop.f32.mrf.mxu0
        %v443 = vadd.f32 0.0, %v442
        %444 = vmatmul.f32.gmra.mxu0 %v295
        %v445 = vpop.f32.mrf.mxu0
        %v446 = vadd.f32 0.0, %v445
        %447 = vdwg.mxu0
        %448 = vmatpush.msra.mxu0 %v360
        %449 = vmatpush.msra.mxu0 %v358
        %450 = vmatpush.msra.mxu0 %v356
        %451 = vmatpush.msra.mxu0 %v354
        %452 = vmatpush.msra.mxu0 %v352
        %453 = vmatpush.msra.mxu0 %v350
        %454 = vmatpush.msra.mxu0 %v348
        %455 = vmatpush.msra.mxu0 %v346
        %456 = vmatpush.msra.mxu0 %v344
        %457 = vmatpush.msra.mxu0 %v342
        %458 = vmatpush.msra.mxu0 %v340
        %459 = vmatpush.msra.mxu0 %v338
        %460 = vmatpush.msra.mxu0 %v336
        %461 = vmatpush.msra.mxu0 %v334
        %462 = vmatpush.msra.mxu0 %v332
        %463 = vmatpush.msra.mxu0 %v330
        %464 = vmatmul.f32.gmra.mxu0 %v290
        %v465 = vpop.f32.mrf.mxu0
        %v466 = vadd.f32 %v437, %v465
        %467 = vmatmul.f32.gmra.mxu0 %v292
        %v468 = vpop.f32.mrf.mxu0
        %v469 = vadd.f32 %v440, %v468
        %470 = vmatmul.f32.gmra.mxu0 %v294
        %v471 = vpop.f32.mrf.mxu0
        %v472 = vadd.f32 %v443, %v471
        %473 = vmatmul.f32.gmra.mxu0 %v296
        %v474 = vpop.f32.mrf.mxu0
        %v475 = vadd.f32 %v446, %v474
        %476 = vdwg.mxu0
        %v477 = vxor.u32 %v408, 2147483648
        %v478 = vxor.u32 %v411, 2147483648
        %v479 = vxor.u32 %v414, 2147483648
        %v480 = vxor.u32 %v417, 2147483648
        %v481 = vmul.f32 %v477, 1.442695
        %v482 = vpow.pop %v481
        %v483 = vmul.f32 %v478, 1.442695
        %v484 = vpow.pop %v483
        %v485 = vmul.f32 %v479, 1.442695
        %v486 = vpow.pop %v485
        %v487 = vmul.f32 %v480, 1.442695
        %v488 = vpow.pop %v487
        %v489 = vadd.f32 %v482, 1.0
        %v490 = vadd.f32 %v484, 1.0
        %v491 = vadd.f32 %v486, 1.0
        %v492 = vadd.f32 %v488, 1.0
        %v493 = vrcp.pop %v489
        %v494 = vmul.f32 %v489, %v493
        %v495 = vsub.f32 1.0, %v494
        %v496 = vmul.f32 %v493, %v495
        %v497 = vadd.f32 %v493, %v496
        %vm498 = vweird.f32 %v489
        %vm499 = vweird.f32 %v493
        %vm500 = vmor %vm498, %vm499
        %v501 = vsel %vm500, %v493, %v497
        %v502 = vand.u32 2147483647, %v489
        %vm503 = vcmp.eq.f32.partialorder %v502, 8.507059e+37
        %v504 = vand.u32 %v489, 2147483648
        %v505 = vor.u32 1.1754944e-38, %v504
        %v506 = vsel %vm503, %v505, %v501
        %v507 = vmul.f32 1.0, %v506
        %v508 = vrcp.pop %v490
        %v509 = vmul.f32 %v490, %v508
        %v510 = vsub.f32 1.0, %v509
        %v511 = vmul.f32 %v508, %v510
        %v512 = vadd.f32 %v508, %v511
        %vm513 = vweird.f32 %v490
        %vm514 = vweird.f32 %v508
        %vm515 = vmor %vm513, %vm514
        %v516 = vsel %vm515, %v508, %v512
        %v517 = vand.u32 2147483647, %v490
        %vm518 = vcmp.eq.f32.partialorder %v517, 8.507059e+37
        %v519 = vand.u32 %v490, 2147483648
        %v520 = vor.u32 1.1754944e-38, %v519
        %v521 = vsel %vm518, %v520, %v516
        %v522 = vmul.f32 1.0, %v521
        %v523 = vrcp.pop %v491
        %v524 = vmul.f32 %v491, %v523
        %v525 = vsub.f32 1.0, %v524
        %v526 = vmul.f32 %v523, %v525
        %v527 = vadd.f32 %v523, %v526
        %vm528 = vweird.f32 %v491
        %vm529 = vweird.f32 %v523
        %vm530 = vmor %vm528, %vm529
        %v531 = vsel %vm530, %v523, %v527
        %v532 = vand.u32 2147483647, %v491
        %vm533 = vcmp.eq.f32.partialorder %v532, 8.507059e+37
        %v534 = vand.u32 %v491, 2147483648
        %v535 = vor.u32 1.1754944e-38, %v534
        %v536 = vsel %vm533, %v535, %v531
        %v537 = vmul.f32 1.0, %v536
        %v538 = vrcp.pop %v492
        %v539 = vmul.f32 %v492, %v538
        %v540 = vsub.f32 1.0, %v539
        %v541 = vmul.f32 %v538, %v540
        %v542 = vadd.f32 %v538, %v541
        %vm543 = vweird.f32 %v492
        %vm544 = vweird.f32 %v538
        %vm545 = vmor %vm543, %vm544
        %v546 = vsel %vm545, %v538, %v542
        %v547 = vand.u32 2147483647, %v492
        %vm548 = vcmp.eq.f32.partialorder %v547, 8.507059e+37
        %v549 = vand.u32 %v492, 2147483648
        %v550 = vor.u32 1.1754944e-38, %v549
        %v551 = vsel %vm548, %v550, %v546
        %v552 = vmul.f32 1.0, %v551
        %v553 = vmul.f32 %v408, %v507
        %v554 = vmul.f32 %v411, %v522
        %v555 = vmul.f32 %v414, %v537
        %v556 = vmul.f32 %v417, %v552
        %v557 = vmul.f32 %v553, %v466
        %v558 = vmul.f32 %v554, %v469
        %v559 = vmul.f32 %v555, %v472
        %v560 = vmul.f32 %v556, %v475
        %v561 = vld [vmem:[#allocation2] sm:$0xff]
        %v562 = vld [vmem:[#allocation2 + $0x8] sm:$0xff]
        %v563 = vld [vmem:[#allocation2 + $0x10] sm:$0xff]
        %v564 = vld [vmem:[#allocation2 + $0x18] sm:$0xff]
        %v565 = vld [vmem:[#allocation2 + $0x20] sm:$0xff]
        %v566 = vld [vmem:[#allocation2 + $0x28] sm:$0xff]
        %v567 = vld [vmem:[#allocation2 + $0x30] sm:$0xff]
        %v568 = vld [vmem:[#allocation2 + $0x38] sm:$0xff]
        %v569 = vld [vmem:[%s244] sm:$0xff]
        %v570 = vld [vmem:[%s244 + $0x8] sm:$0xff]
        %v571 = vld [vmem:[%s244 + $0x10] sm:$0xff]
        %v572 = vld [vmem:[%s244 + $0x18] sm:$0xff]
        %v573 = vld [vmem:[%s244 + $0x20] sm:$0xff]
        %v574 = vld [vmem:[%s244 + $0x28] sm:$0xff]
        %v575 = vld [vmem:[%s244 + $0x30] sm:$0xff]
        %v576 = vld [vmem:[%s244 + $0x38] sm:$0xff]
        %v577 = vld [vmem:[%s244 + $0x40] sm:$0xff]
        %v578 = vld [vmem:[%s244 + $0x48] sm:$0xff]
        %v579 = vld [vmem:[%s244 + $0x50] sm:$0xff]
        %v580 = vld [vmem:[%s244 + $0x58] sm:$0xff]
        %v581 = vld [vmem:[%s244 + $0x60] sm:$0xff]
        %v582 = vld [vmem:[%s244 + $0x68] sm:$0xff]
        %v583 = vld [vmem:[%s244 + $0x70] sm:$0xff]
        %v584 = vld [vmem:[%s244 + $0x78] sm:$0xff]
        %v585 = vld [vmem:[%s244 + $0x80] sm:$0xff]
        %v586 = vld [vmem:[%s244 + $0x88] sm:$0xff]
        %v587 = vld [vmem:[%s244 + $0x90] sm:$0xff]
        %v588 = vld [vmem:[%s244 + $0x98] sm:$0xff]
        %v589 = vld [vmem:[%s244 + $0xa0] sm:$0xff]
        %v590 = vld [vmem:[%s244 + $0xa8] sm:$0xff]
        %v591 = vld [vmem:[%s244 + $0xb0] sm:$0xff]
        %v592 = vld [vmem:[%s244 + $0xb8] sm:$0xff]
        %v593 = vld [vmem:[%s244 + $0xc0] sm:$0xff]
        %v594 = vld [vmem:[%s244 + $0xc8] sm:$0xff]
        %v595 = vld [vmem:[%s244 + $0xd0] sm:$0xff]
        %v596 = vld [vmem:[%s244 + $0xd8] sm:$0xff]
        %v597 = vld [vmem:[%s244 + $0xe0] sm:$0xff]
        %v598 = vld [vmem:[%s244 + $0xe8] sm:$0xff]
        %v599 = vld [vmem:[%s244 + $0xf0] sm:$0xff]
        %v600 = vld [vmem:[%s244 + $0xf8] sm:$0xff]
        %601 = vmatpush.msra.mxu0 %v599
        %602 = vmatpush.msra.mxu0 %v597
        %603 = vmatpush.msra.mxu0 %v595
        %604 = vmatpush.msra.mxu0 %v593
        %605 = vmatpush.msra.mxu0 %v591
        %606 = vmatpush.msra.mxu0 %v589
        %607 = vmatpush.msra.mxu0 %v587
        %608 = vmatpush.msra.mxu0 %v585
        %609 = vmatpush.msra.mxu0 %v583
        %610 = vmatpush.msra.mxu0 %v581
        %611 = vmatpush.msra.mxu0 %v579
        %612 = vmatpush.msra.mxu0 %v577
        %613 = vmatpush.msra.mxu0 %v575
        %614 = vmatpush.msra.mxu0 %v573
        %615 = vmatpush.msra.mxu0 %v571
        %616 = vmatpush.msra.mxu0 %v569
        %617 = vmatmul.f32.gmra.mxu0 %v557
        %v618 = vpop.f32.mrf.mxu0
        %v619 = vadd.f32 0.0, %v618
        %620 = vmatmul.f32.gmra.mxu0 %v558
        %v621 = vpop.f32.mrf.mxu0
        %v622 = vadd.f32 0.0, %v621
        %623 = vmatmul.f32.gmra.mxu0 %v559
        %v624 = vpop.f32.mrf.mxu0
        %v625 = vadd.f32 0.0, %v624
        %626 = vmatmul.f32.gmra.mxu0 %v560
        %v627 = vpop.f32.mrf.mxu0
        %v628 = vadd.f32 0.0, %v627
        %629 = vdwg.mxu0
        %630 = vmatpush.msra.mxu0 %v600
        %631 = vmatpush.msra.mxu0 %v598
        %632 = vmatpush.msra.mxu0 %v596
        %633 = vmatpush.msra.mxu0 %v594
        %634 = vmatpush.msra.mxu0 %v592
        %635 = vmatpush.msra.mxu0 %v590
        %636 = vmatpush.msra.mxu0 %v588
        %637 = vmatpush.msra.mxu0 %v586
        %638 = vmatpush.msra.mxu0 %v584
        %639 = vmatpush.msra.mxu0 %v582
        %640 = vmatpush.msra.mxu0 %v580
        %641 = vmatpush.msra.mxu0 %v578
        %642 = vmatpush.msra.mxu0 %v576
        %643 = vmatpush.msra.mxu0 %v574
        %644 = vmatpush.msra.mxu0 %v572
        %645 = vmatpush.msra.mxu0 %v570
        %646 = vmatmul.f32.gmra.mxu0 %v557
        %v647 = vpop.f32.mrf.mxu0
        %v648 = vadd.f32 0.0, %v647
        %649 = vmatmul.f32.gmra.mxu0 %v558
        %v650 = vpop.f32.mrf.mxu0
        %v651 = vadd.f32 0.0, %v650
        %652 = vmatmul.f32.gmra.mxu0 %v559
        %v653 = vpop.f32.mrf.mxu0
        %v654 = vadd.f32 0.0, %v653
        %655 = vmatmul.f32.gmra.mxu0 %v560
        %v656 = vpop.f32.mrf.mxu0
        %v657 = vadd.f32 0.0, %v656
        %658 = vdwg.mxu0
        %v659 = vadd.f32 %v561, %v619
        %v660 = vadd.f32 %v562, %v648
        %v661 = vadd.f32 %v563, %v622
        %v662 = vadd.f32 %v564, %v651
        %v663 = vadd.f32 %v565, %v625
        %v664 = vadd.f32 %v566, %v654
        %v665 = vadd.f32 %v567, %v628
        %v666 = vadd.f32 %v568, %v657
        %667 = vst [vmem:[#allocation2] sm:$0xff] %v659
        %668 = vst [vmem:[#allocation2 + $0x8] sm:$0xff] %v660
        %669 = vst [vmem:[#allocation2 + $0x10] sm:$0xff] %v661
        %670 = vst [vmem:[#allocation2 + $0x18] sm:$0xff] %v662
        %671 = vst [vmem:[#allocation2 + $0x20] sm:$0xff] %v663
        %672 = vst [vmem:[#allocation2 + $0x28] sm:$0xff] %v664
        %673 = vst [vmem:[#allocation2 + $0x30] sm:$0xff] %v665
        %674 = vst [vmem:[#allocation2 + $0x38] sm:$0xff] %v666
        %p675 = scmp.eq.s32.totalorder %s24, 3
        // Predicated region
        $region49: #{tpu_custom_call.1} parent=31 // pred_check
          %p676 = pneg %p675
        $region50: #{tpu_custom_call.1} parent=31 // pred_check_branch
          %678 = sbr.rel (%p676) target = $region52
        $region51: #{tpu_custom_call.1} parent=31 // pred_region
          %v679 = vld [vmem:[#allocation2] sm:$0xff]
          %v680 = vld [vmem:[#allocation2 + $0x8] sm:$0xff]
          %v681 = vld [vmem:[#allocation2 + $0x10] sm:$0xff]
          %v682 = vld [vmem:[#allocation2 + $0x18] sm:$0xff]
          %v683 = vld [vmem:[#allocation2 + $0x20] sm:$0xff]
          %v684 = vld [vmem:[#allocation2 + $0x28] sm:$0xff]
          %v685 = vld [vmem:[#allocation2 + $0x30] sm:$0xff]
          %v686 = vld [vmem:[#allocation2 + $0x38] sm:$0xff]
          %687 = vst [vmem:[#allocation9] sm:$0xff] %v679
          %688 = vst [vmem:[#allocation9 + $0x8] sm:$0xff] %v680
          %689 = vst [vmem:[#allocation9 + $0x10] sm:$0xff] %v681
          %690 = vst [vmem:[#allocation9 + $0x18] sm:$0xff] %v682
          %691 = vst [vmem:[#allocation9 + $0x20] sm:$0xff] %v683
          %692 = vst [vmem:[#allocation9 + $0x28] sm:$0xff] %v684
          %693 = vst [vmem:[#allocation9 + $0x30] sm:$0xff] %v685
          %694 = vst [vmem:[#allocation9 + $0x38] sm:$0xff] %v686
        $region52: #{tpu_custom_call.1} parent=31 // pred_fallthru
          _
        // Predicated region
        $region53: #{tpu_custom_call.1} parent=31 // pred_check
          %p695 = pneg %p127
        $region54: #{tpu_custom_call.1} parent=31 // pred_check_branch
          %697 = sbr.rel (%p695) target = $region56
        $region55: #{tpu_custom_call.1} parent=31 // pred_region
          %s698 = smul.u32 4, %s23
          %s699 = ssub.s32 3, %s698
          %s700 = smul.u32 8, %s699
          %s701 = smul.u32 %s700, 2
          %s702 = ssub.s32 64, %s701
          %s703 = sshll.u32 %s702, 4
          %704 = vsyncadd [#allocation5], %s703
          %p705 = scmp.ne.s32.totalorder 0, %s701
          %s706 = smul.addr %s698, 2
          %s707 = smul.addr %s706, 8
          %s708 = scalar_lea.hbm %s3, %s707
          %s709 = smul.u32 16, %s699
          %s710 = sshll.u32 [#allocation9], 4
          %s711 = int_to_ptr.vmem [resolvable:$true] %s710
          %s712 = sshll.u32 %s708, 4
          %s713 = int_to_ptr.hbm [resolvable:$true] %s712
          %s714 = sshll.u32 %s709, 4
          %718 = dma.vmem_to_hbm [thread:$0]  (%p705), %s711, %s714, %s713, [#allocation5], 256, 256, 16
        $region56: #{tpu_custom_call.1} parent=31 // pred_fallthru
          _
        // Predicated region
        $region57: #{tpu_custom_call.1} parent=31 // pred_check
          %p719 = pneg %p127
        $region58: #{tpu_custom_call.1} parent=31 // pred_check_branch
          %721 = sbr.rel (%p719) target = $region60
        $region59: #{tpu_custom_call.1} parent=31 // pred_region
          %723 = dma.done [#allocation5], 1024
        $region60: #{tpu_custom_call.1} parent=31 // pred_fallthru
          _
      $region32: #{tpu_custom_call.1} parent=5 // pred_fallthru
        _
      %p724 = scmp.le.s32.totalorder 2, %s14
      // Predicated region
      $region61: #{tpu_custom_call.1} parent=5 // pred_check
        %p725 = pneg %p724
      $region62: #{tpu_custom_call.1} parent=5 // pred_check_branch
        %727 = sbr.rel (%p725) target = $region64
      $region63: #{tpu_custom_call.1} parent=5 // pred_region
        %s728 = ssub.s32 %s14, 2
      $region64: #{tpu_custom_call.1} parent=5 // pred_fallthru
        _
    $region6: #{tpu_custom_call.1} parent=1 // loop_footer
      %s18 = sadd.s32 1, %s14
    $region7: #{tpu_custom_call.1} parent=1 // loop_footer_branch
      %13 = sbr.rel target = $region3
    $region8: #{tpu_custom_call.1} parent=1 // loop_exit
      _
    %729 = vsyncpa [#allocation4], 1
    %s730 = scalar_lea.sflag [#allocation4], 1
    %731 = vsyncpa %s730, 1
    %732 = vsyncpa [#allocation7], 1
    %s733 = scalar_lea.sflag [#allocation7], 1
    %734 = vsyncpa %s733, 1
    %735 = vsyncpa [#allocation5], 1
    %s736 = scalar_lea.sflag [#allocation5], 1
    %737 = vsyncpa %s736, 1

</llo_original>
